<compile_context>
chip_gen: v5e
topology: v5e:2x2
jax: 0.10.0
libtpu: 0.0.40
codegen_flags: <defaults>
</compile_context>

<pallas_src>
import math
import jax
import jax.numpy as jnp
from jax.experimental import pallas as pl
from jax.experimental.pallas import tpu as pltpu


def _round_up(x, m):
    return ((x + m - 1) // m) * m


# ----------------------------- Pallas kernel --------------------------------
def decoder_kernel(x_ref, w0_ref, w12_ref, wh_ref, b_ref, out_ref):
    f32, bf16 = jnp.float32, jnp.bfloat16
    Y2 = out_ref.shape[-1]
    Y = Y2 // 2

    b0 = b_ref[0:1, :]          # (1, 128) f32
    b1 = b_ref[1:2, :]
    b2 = b_ref[2:3, :]
    bh = b_ref[3:4, :Y2]        # (1, 2Y)  f32

    # layer 0: single [r|z|tx] stream (target projection folded into W0)
    h = jnp.dot(x_ref[...], w0_ref[...], preferred_element_type=f32)
    h = jnp.maximum(h + b0, 0.0).astype(bf16)

    # layers 1 and 2 (stacked weights)
    h = jnp.maximum(
        jnp.dot(h, w12_ref[0], preferred_element_type=f32) + b1, 0.0).astype(bf16)
    h = jnp.maximum(
        jnp.dot(h, w12_ref[1], preferred_element_type=f32) + b2, 0.0).astype(bf16)

    # fused heads: columns [0:Y] = mu, [Y:2Y] = log_sigma
    head = jnp.dot(h, wh_ref[...], preferred_element_type=f32) + bh

    # sigma = 0.1 + 0.9 * softplus(log_sigma), numerically stable softplus
    sp = jnp.maximum(head, 0.0) + jnp.log1p(jnp.exp(-jnp.abs(head)))
    col = jax.lax.broadcasted_iota(jnp.int32, head.shape, 1)
    out_ref[...] = jnp.where(col >= Y, 0.1 + 0.9 * sp, head)


# ------------------------------- packing -------------------------------------
def prepare_kernel_params(params):
    """One-time weight packing:
       - fold the target projection into layer 0 (exact linear composition, f32)
       - zero-pad hidden width 96 -> 128 and the input-stream width to 128
       - stack w1/w2 and all biases; cast matmul weights to bf16."""
    bf16, f32 = jnp.bfloat16, jnp.float32
    X, H = params["wt"].shape                # wt: (X, H)
    H3 = params["w0"].shape[0]               # 3H
    Y = params["wmu"].shape[1]
    Y2 = 2 * Y

    w0 = params["w0"]
    w0ab = w0[: 2 * H]                       # multiplies cat([r, z])
    w0c = w0[2 * H:]                         # multiplies the target projection
    w_tx = params["wt"] @ w0c                # (X, 3H)   exact f32 fold
    b0f = params["b0"] + params["bt"] @ w0c  # (1, 3H)

    C = 2 * H + X                            # raw [r|z|tx] stream width
    Cp = _round_up(C, 128)                   # padded (lane-dense) stream width
    Hp = _round_up(H3, 128)                  # padded hidden width

    w0s = (jnp.zeros((Cp, Hp), f32)
           .at[: 2 * H, :H3].set(w0ab)
           .at[2 * H: C, :H3].set(w_tx))

    def pad_w(w):
        return jnp.zeros((Hp, Hp), f32).at[:H3, :H3].set(w)

    w12 = jnp.stack([pad_w(params["w1"]), pad_w(params["w2"])])

    whead = jnp.concatenate([params["wmu"], params["wstd"]], axis=1)   # (3H, 2Y)
    whead = jnp.zeros((Hp, Y2), f32).at[:H3, :].set(whead)

    def pad_b(b):
        return jnp.zeros((Hp,), f32).at[: b.shape[1]].set(b[0])

    bhead = jnp.concatenate([params["bmu"], params["bstd"]], axis=1)
    biases = jnp.stack([pad_b(b0f), pad_b(params["b1"]),
                        pad_b(params["b2"]), pad_b(bhead)])             # (4, Hp)

    return {
        "x_width": C, "x_width_padded": Cp, "hidden": H, "y": Y,
        "w0": w0s.astype(bf16),
        "w12": w12.astype(bf16),
        "whead": whead.astype(bf16),
        "biases": biases.astype(f32),
    }


# ------------------------------- wrapper -------------------------------------
def decoder_forward(kp, r, z, target_x, tile_m=2048, min_grid_steps=2):
    B, T, H = r.shape
    X = target_x.shape[-1]
    C, Cp = kp["x_width"], kp["x_width_padded"]
    Y = kp["y"]
    Y2 = 2 * Y
    M = B * T
    bf16 = jnp.bfloat16

    # Single lane-dense [r|z|tx|0] bf16 stream (one fused XLA concat/cast pass).
    pieces = [r.astype(bf16).reshape(M, H), z.astype(bf16).reshape(M, H),
              target_x.astype(bf16).reshape(M, X)]
    if Cp > C:
        pieces.append(jnp.zeros((M, Cp - C), bf16))
    x = jnp.concatenate(pieces, axis=-1)

    # Row tile: multiple of 16 (bf16 sublane pack).  Cap so the grid has at
    # least `min_grid_steps` steps (v7x has 2 TensorCores sharing the
    # "parallel" axis) while allowing up to tile_m rows to amortize per-step
    # overhead on single-TC v5e/v6e.
    TM = max(16, min(tile_m, _round_up(pl.cdiv(M, min_grid_steps), 16)))
    M_pad = _round_up(M, TM)
    if M_pad != M:
        x = jnp.pad(x, ((0, M_pad - M), (0, 0)))

    def row_spec(shape):
        return pl.BlockSpec(shape, lambda i: (i, 0))

    out = pl.pallas_call(
        decoder_kernel,
        out_shape=jax.ShapeDtypeStruct((M_pad, Y2), jnp.float32),
        grid=(M_pad // TM,),
        in_specs=[
            row_spec((TM, Cp)),                                       # activations
            pl.BlockSpec(kp["w0"].shape, lambda i: (0, 0)),           # resident
            pl.BlockSpec(kp["w12"].shape, lambda i: (0, 0, 0)),       # resident
            pl.BlockSpec(kp["whead"].shape, lambda i: (0, 0)),        # resident
            pl.BlockSpec(kp["biases"].shape, lambda i: (0, 0)),       # resident
        ],
        out_specs=row_spec((TM, Y2)),
        compiler_params=pltpu.CompilerParams(
            dimension_semantics=("parallel",),
        ),
    )(x, kp["w0"], kp["w12"], kp["whead"], kp["biases"])

    mu = out[:M, :Y].reshape(B, T, Y)
    sigma = out[:M, Y:].reshape(B, T, Y)
    return mu, sigma


# --------------------------- deterministic init -------------------------------
def xavier_uniform(key, in_dim, out_dim, gain):
    a = gain * math.sqrt(6.0 / (in_dim + out_dim))
    # stored as (in, out) so the kernel does x @ W  (PyTorch stores (out, in))
    return jax.random.uniform(key, (in_dim, out_dim), jnp.float32, -a, a)


def make_params(key, num_hidden, input_dim, y_dim):
    H, X, Y = num_hidden, input_dim - y_dim, y_dim
    gain = math.sqrt(2.0)  # calculate_gain('relu')
    keys = jax.random.split(key, 12)

    def bias(k, fan_in, out_dim):
        b = 1.0 / math.sqrt(fan_in)
        return jax.random.uniform(k, (1, out_dim), jnp.float32, -b, b)

    return {
        "wt":   xavier_uniform(keys[0], X, H, gain),         "bt":   bias(keys[1], X, H),
        "w0":   xavier_uniform(keys[2], 3 * H, 3 * H, gain), "b0":   bias(keys[3], 3 * H, 3 * H),
        "w1":   xavier_uniform(keys[4], 3 * H, 3 * H, gain), "b1":   bias(keys[5], 3 * H, 3 * H),
        "w2":   xavier_uniform(keys[6], 3 * H, 3 * H, gain), "b2":   bias(keys[7], 3 * H, 3 * H),
        "wmu":  xavier_uniform(keys[8], 3 * H, Y, gain),     "bmu":  bias(keys[9], 3 * H, Y),
        "wstd": xavier_uniform(keys[10], 3 * H, Y, gain),    "bstd": bias(keys[11], 3 * H, Y),
    }


# ------------------------------ pure-JAX references ---------------------------
def decoder_ref_f32(params, r, z, target_x):
    """Exact f32 semantics of the PyTorch module (unfused weights)."""
    tx = target_x @ params["wt"] + params["bt"][0]
    hidden = jnp.concatenate([r, z, tx], axis=-1)
    hidden = jax.nn.relu(hidden @ params["w0"] + params["b0"][0])
    hidden = jax.nn.relu(hidden @ params["w1"] + params["b1"][0])
    hidden = jax.nn.relu(hidden @ params["w2"] + params["b2"][0])
    mu = hidden @ params["wmu"] + params["bmu"][0]
    ls = hidden @ params["wstd"] + params["bstd"][0]
    return mu, 0.1 + 0.9 * jax.nn.softplus(ls)


def decoder_ref_packed(kp, r, z, target_x):
    """Mirrors the kernel's numerics exactly: same fused/padded bf16 weights,
    bf16 matmuls with f32 accumulation."""
    f32, bf16 = jnp.float32, jnp.bfloat16
    B, T, H = r.shape
    X = target_x.shape[-1]
    C, Cp = kp["x_width"], kp["x_width_padded"]
    Y = kp["y"]
    M = B * T

    x = jnp.concatenate(
        [r.reshape(M, H), z.reshape(M, H), target_x.reshape(M, X),
         jnp.zeros((M, Cp - C), jnp.float32)], axis=-1).astype(bf16)

    def mm(a, w):
        return jnp.dot(a, w, preferred_element_type=f32)

    b = kp["biases"]
    h = jax.nn.relu(mm(x, kp["w0"]) + b[0]).astype(bf16)
    h = jax.nn.relu(mm(h, kp["w12"][0]) + b[1]).astype(bf16)
    h = jax.nn.relu(mm(h, kp["w12"][1]) + b[2]).astype(bf16)
    head = mm(h, kp["whead"]) + b[3, :2 * Y]
    mu = head[:, :Y]
    sigma = 0.1 + 0.9 * jax.nn.softplus(head[:, Y:])
    return mu.reshape(B, T, Y), sigma.reshape(B, T, Y)


if __name__ == "__main__":
    # Small shapes consistent with the module:
    #   num_hidden=32, input_dim=5, y_dim=2 -> target_x has input_dim-y_dim=3 feats
    B, T, H, INPUT_DIM, Y = 2, 8, 32, 5, 2
    X = INPUT_DIM - Y

    key = jax.random.PRNGKey(0)
    kp_key, kr, kz, kx = jax.random.split(key, 4)
    params = make_params(kp_key, H, INPUT_DIM, Y)
    kparams = prepare_kernel_params(params)

    r = jax.random.normal(kr, (B, T, H), jnp.float32)
    z = jax.random.normal(kz, (B, T, H), jnp.float32)
    target_x = jax.random.normal(kx, (B, T, X), jnp.float32)

    mu, sigma = decoder_forward(kparams, r, z, target_x)
    jax.block_until_ready((mu, sigma))
    assert mu.shape == (B, T, Y) and sigma.shape == (B, T, Y)

    # Tight check against a reference with identical fused-bf16 numerics.
    mu_b, sigma_b = decoder_ref_packed(kparams, r, z, target_x)
    assert jnp.allclose(mu, mu_b, atol=2e-3, rtol=2e-3)
    assert jnp.allclose(sigma, sigma_b, atol=2e-3, rtol=2e-3)

    # Loose sanity check against the exact-f32 PyTorch semantics.
    mu_f, sigma_f = decoder_ref_f32(params, r, z, target_x)
    assert jnp.allclose(mu, mu_f, atol=1e-1, rtol=1e-1)
    assert jnp.allclose(sigma, sigma_f, atol=1e-1, rtol=1e-1)

    # sigma = 0.1 + 0.9 * softplus(.) >= 0.1
    assert bool(jnp.all(sigma >= 0.1))

    # Exercise a multi-step grid (row padding + "parallel" axis with >= 2 steps).
    B2, T2 = 4, 100
    kr2, kz2, kx2 = jax.random.split(jax.random.PRNGKey(1), 3)
    r2 = jax.random.normal(kr2, (B2, T2, H), jnp.float32)
    z2 = jax.random.normal(kz2, (B2, T2, H), jnp.float32)
    tx2 = jax.random.normal(kx2, (B2, T2, X), jnp.float32)
    mu2, sigma2 = decoder_forward(kparams, r2, z2, tx2)
    jax.block_until_ready((mu2, sigma2))
    mu2_b, sigma2_b = decoder_ref_packed(kparams, r2, z2, tx2)
    assert jnp.allclose(mu2, mu2_b, atol=2e-3, rtol=2e-3)
    assert jnp.allclose(sigma2, sigma2_b, atol=2e-3, rtol=2e-3)

    print("KERNEL_OK")
</pallas_src>

<mosaic_0001>
module attributes {stable_mosaic.version = 11 : i64} {
  func.func @decoder_kernel(%arg0: i32, %arg1: memref<16x128xbf16, #tpu.memory_space<vmem>>, %arg2: memref<128x128xbf16, #tpu.memory_space<vmem>>, %arg3: memref<2x128x128xbf16, #tpu.memory_space<vmem>>, %arg4: memref<128x4xbf16, #tpu.memory_space<vmem>>, %arg5: memref<4x128xf32, #tpu.memory_space<vmem>>, %arg6: memref<16x4xf32, #tpu.memory_space<vmem>>) attributes {dimension_semantics = [#tpu.dimension_semantics<parallel>], iteration_bounds = array<i64: 1>, scalar_prefetch = 0 : i64, scratch_operands = 0 : i64, tpu.core_type = #tpu.core_type<tc>, window_params = [{transform_indices = @transform_0, window_bounds = array<i64: 16, 128>}, {pipeline_mode = #tpu.pipeline_mode<synchronous>, transform_indices = @transform_1, window_bounds = array<i64: 128, 128>}, {pipeline_mode = #tpu.pipeline_mode<synchronous>, transform_indices = @transform_2, window_bounds = array<i64: 2, 128, 128>}, {pipeline_mode = #tpu.pipeline_mode<synchronous>, transform_indices = @transform_3, window_bounds = array<i64: 128, 4>}, {pipeline_mode = #tpu.pipeline_mode<synchronous>, transform_indices = @transform_4, window_bounds = array<i64: 4, 128>}, {transform_indices = @transform_5, window_bounds = array<i64: 16, 4>}]} {
    %c0 = arith.constant 0 : index
    %c0_0 = arith.constant 0 : index
    %0 = vector.load %arg5[%c0, %c0_0] : memref<4x128xf32, #tpu.memory_space<vmem>>, vector<1x128xf32>
    %c1 = arith.constant 1 : index
    %c0_1 = arith.constant 0 : index
    %1 = vector.load %arg5[%c1, %c0_1] : memref<4x128xf32, #tpu.memory_space<vmem>>, vector<1x128xf32>
    %c2 = arith.constant 2 : index
    %c0_2 = arith.constant 0 : index
    %2 = vector.load %arg5[%c2, %c0_2] : memref<4x128xf32, #tpu.memory_space<vmem>>, vector<1x128xf32>
    %c3 = arith.constant 3 : index
    %c0_3 = arith.constant 0 : index
    %3 = vector.load %arg5[%c3, %c0_3] : memref<4x128xf32, #tpu.memory_space<vmem>>, vector<1x4xf32>
    %c0_4 = arith.constant 0 : index
    %c0_5 = arith.constant 0 : index
    %4 = vector.load %arg1[%c0_4, %c0_5] : memref<16x128xbf16, #tpu.memory_space<vmem>>, vector<16x128xbf16>
    %c0_6 = arith.constant 0 : index
    %c0_7 = arith.constant 0 : index
    %5 = vector.load %arg2[%c0_6, %c0_7] : memref<128x128xbf16, #tpu.memory_space<vmem>>, vector<128x128xbf16>
    %cst = arith.constant dense<0.000000e+00> : vector<16x128xf32>
    %6 = tpu.matmul %4, %5, %cst {dimension_numbers = #tpu.dot_dimension_numbers<[1], [0], [0], [1], [0, 0, 1, 1], [], []>} : vector<16x128xbf16>, vector<128x128xbf16>, vector<16x128xf32> -> vector<16x128xf32>
    %7 = vector.broadcast %0 : vector<1x128xf32> to vector<16x128xf32>
    %8 = arith.addf %6, %7 : vector<16x128xf32>
    %cst_8 = arith.constant 0.000000e+00 : f32
    %9 = vector.broadcast %cst_8 : f32 to vector<16x128xf32>
    %10 = arith.maximumf %8, %9 : vector<16x128xf32>
    %11 = arith.truncf %10 : vector<16x128xf32> to vector<16x128xbf16>
    %c0_9 = arith.constant 0 : index
    %c0_10 = arith.constant 0 : index
    %c0_11 = arith.constant 0 : index
    %12 = vector.load %arg3[%c0_9, %c0_10, %c0_11] : memref<2x128x128xbf16, #tpu.memory_space<vmem>>, vector<1x128x128xbf16>
    %13 = vector.shape_cast %12 : vector<1x128x128xbf16> to vector<128x128xbf16>
    %cst_12 = arith.constant dense<0.000000e+00> : vector<16x128xf32>
    %14 = tpu.matmul %11, %13, %cst_12 {dimension_numbers = #tpu.dot_dimension_numbers<[1], [0], [0], [1], [0, 0, 1, 1], [], []>} : vector<16x128xbf16>, vector<128x128xbf16>, vector<16x128xf32> -> vector<16x128xf32>
    %15 = vector.broadcast %1 : vector<1x128xf32> to vector<16x128xf32>
    %16 = arith.addf %14, %15 : vector<16x128xf32>
    %cst_13 = arith.constant 0.000000e+00 : f32
    %17 = vector.broadcast %cst_13 : f32 to vector<16x128xf32>
    %18 = arith.maximumf %16, %17 : vector<16x128xf32>
    %19 = arith.truncf %18 : vector<16x128xf32> to vector<16x128xbf16>
    %c1_14 = arith.constant 1 : index
    %c0_15 = arith.constant 0 : index
    %c0_16 = arith.constant 0 : index
    %20 = vector.load %arg3[%c1_14, %c0_15, %c0_16] : memref<2x128x128xbf16, #tpu.memory_space<vmem>>, vector<1x128x128xbf16>
    %21 = vector.shape_cast %20 : vector<1x128x128xbf16> to vector<128x128xbf16>
    %cst_17 = arith.constant dense<0.000000e+00> : vector<16x128xf32>
    %22 = tpu.matmul %19, %21, %cst_17 {dimension_numbers = #tpu.dot_dimension_numbers<[1], [0], [0], [1], [0, 0, 1, 1], [], []>} : vector<16x128xbf16>, vector<128x128xbf16>, vector<16x128xf32> -> vector<16x128xf32>
    %23 = vector.broadcast %2 : vector<1x128xf32> to vector<16x128xf32>
    %24 = arith.addf %22, %23 : vector<16x128xf32>
    %cst_18 = arith.constant 0.000000e+00 : f32
    %25 = vector.broadcast %cst_18 : f32 to vector<16x128xf32>
    %26 = arith.maximumf %24, %25 : vector<16x128xf32>
    %27 = arith.truncf %26 : vector<16x128xf32> to vector<16x128xbf16>
    %c0_19 = arith.constant 0 : index
    %c0_20 = arith.constant 0 : index
    %28 = vector.load %arg4[%c0_19, %c0_20] : memref<128x4xbf16, #tpu.memory_space<vmem>>, vector<128x4xbf16>
    %cst_21 = arith.constant dense<0.000000e+00> : vector<16x4xf32>
    %29 = tpu.matmul %27, %28, %cst_21 {dimension_numbers = #tpu.dot_dimension_numbers<[1], [0], [0], [1], [0, 0, 1, 1], [], []>} : vector<16x128xbf16>, vector<128x4xbf16>, vector<16x4xf32> -> vector<16x4xf32>
    %30 = vector.broadcast %3 : vector<1x4xf32> to vector<16x4xf32>
    %31 = arith.addf %29, %30 : vector<16x4xf32>
    %cst_22 = arith.constant 0.000000e+00 : f32
    %32 = vector.broadcast %cst_22 : f32 to vector<16x4xf32>
    %33 = arith.maximumf %31, %32 : vector<16x4xf32>
    %34 = math.absf %31 : vector<16x4xf32>
    %cst_23 = arith.constant 0.000000e+00 : f32
    %35 = vector.broadcast %cst_23 : f32 to vector<16x4xf32>
    %36 = arith.subf %35, %34 : vector<16x4xf32>
    %37 = math.exp %36 : vector<16x4xf32>
    %38 = math.log1p %37 : vector<16x4xf32>
    %39 = arith.addf %33, %38 : vector<16x4xf32>
    %40 = tpu.iota {dimensions = array<i32: 1>} : vector<16x4xi32>
    %c2_i32 = arith.constant 2 : i32
    %41 = vector.broadcast %c2_i32 : i32 to vector<16x4xi32>
    %42 = arith.cmpi sge, %40, %41 : vector<16x4xi32>
    %cst_24 = arith.constant 0.899999976 : f32
    %43 = vector.broadcast %cst_24 : f32 to vector<16x4xf32>
    %44 = arith.mulf %43, %39 : vector<16x4xf32>
    %cst_25 = arith.constant 1.000000e-01 : f32
    %45 = vector.broadcast %cst_25 : f32 to vector<16x4xf32>
    %46 = arith.addf %45, %44 : vector<16x4xf32>
    %47 = arith.select %42, %46, %31 : vector<16x4xi1>, vector<16x4xf32>
    %c0_26 = arith.constant 0 : index
    %c0_27 = arith.constant 0 : index
    %48 = vector.load %arg6[%c0_26, %c0_27] : memref<16x4xf32, #tpu.memory_space<vmem>>, vector<16x4xf32>
    tpu.vector_store %arg6[%c0_26, %c0_27], %47 {strides = array<i32>} : memref<16x4xf32, #tpu.memory_space<vmem>>, vector<16x4xf32>,
    return
  }
  func.func @transform_0(%arg0: i32) -> (i32, i32) {
    %c0_i32 = arith.constant 0 : i32
    %c0_i32_0 = arith.constant 0 : i32
    return %arg0, %c0_i32 : i32, i32
  }
  func.func @transform_1(%arg0: i32) -> (i32, i32) {
    %c0_i32 = arith.constant 0 : i32
    %c0_i32_0 = arith.constant 0 : i32
    %c0_i32_1 = arith.constant 0 : i32
    return %c0_i32, %c0_i32_0 : i32, i32
  }
  func.func @transform_2(%arg0: i32) -> (i32, i32, i32) {
    %c0_i32 = arith.constant 0 : i32
    %c0_i32_0 = arith.constant 0 : i32
    %c0_i32_1 = arith.constant 0 : i32
    %c0_i32_2 = arith.constant 0 : i32
    return %c0_i32, %c0_i32_0, %c0_i32_1 : i32, i32, i32
  }
  func.func @transform_3(%arg0: i32) -> (i32, i32) {
    %c0_i32 = arith.constant 0 : i32
    %c0_i32_0 = arith.constant 0 : i32
    %c0_i32_1 = arith.constant 0 : i32
    return %c0_i32, %c0_i32_0 : i32, i32
  }
  func.func @transform_4(%arg0: i32) -> (i32, i32) {
    %c0_i32 = arith.constant 0 : i32
    %c0_i32_0 = arith.constant 0 : i32
    %c0_i32_1 = arith.constant 0 : i32
    return %c0_i32, %c0_i32_0 : i32, i32
  }
  func.func @transform_5(%arg0: i32) -> (i32, i32) {
    %c0_i32 = arith.constant 0 : i32
    %c0_i32_0 = arith.constant 0 : i32
    return %arg0, %c0_i32 : i32, i32
  }
}

</mosaic_0001>

<llo_original>
// kernel: tpu_custom_call.1
$region0: #{tpu_custom_call.1}
  #allocation0 [shape = 'u32[]', space=smem, size = 0x4, offset = 0x4, fixed_abs, tag = 'smem constant byte address 0x4 - core index']
  #allocation1 [shape = 'u32[72,128]{1,0:T(1,128)}', space=vmem, size = 0x9000, scoped, tag = 'internal scratch']
  %s0 = inlined_call_operand.hbm [shape: bf16[16,128], index: 0, kind: input, shape index: {}]
  %s1 = inlined_call_operand.vmem [shape: bf16[128,128], index: 1, kind: input, shape index: {}]
  %s2 = inlined_call_operand.hbm [shape: bf16[2,128,128], index: 2, kind: input, shape index: {}]
  %s3 = inlined_call_operand.vmem [shape: bf16[128,4], index: 3, kind: input, shape index: {}]
  %s4 = inlined_call_operand.hbm [shape: f32[4,128], index: 4, kind: input, shape index: {}]
  %s5 = inlined_call_operand.vmem [shape: f32[16,4], index: 5, kind: output, shape index: {}]
  %s6 = sld [smem:[#allocation0]]
  $region42: #{tpu_custom_call.1} parent=0
    _
  %s8 = ssub.s32 1, %s6
  %s9 = scalar_select 0, %s8, %s6
  $region1: #{tpu_custom_call.1} parent=0
    #allocation2 [shape = 'u8[4096]{0}', space=vmem, size = 0x1000, scoped, tag = 'input window, operand 0, single buffered']
    #allocation3 [shape = 's32[1]{0}', space=sflag, size = 0x4, scoped, tag = 'scoped memory for tpu_custom_call.1']
    #allocation4 [shape = 'u8[65536]{0}', space=vmem, size = 0x10000, scoped, tag = 'input window, operand 2, single buffered']
    #allocation5 [shape = 's32[1]{0}', space=sflag, size = 0x4, scoped, tag = 'scoped memory for tpu_custom_call.1']
    #allocation6 [shape = 'u8[2048]{0}', space=vmem, size = 0x800, scoped, tag = 'input window, operand 4, single buffered']
    %10 = vsyncpa [#allocation3], 0
    %11 = vsyncpa [#allocation5], 0
    // Predicated region
    $region2: #{tpu_custom_call.1} parent=1 // pred_check
      _
    $region3: #{tpu_custom_call.1} parent=1 // pred_check_branch
      %13 = sbr.rel (0) target = $region5
    $region4: #{tpu_custom_call.1} parent=1 // pred_region
      %15 = vsyncadd [#allocation3], 0
      %s16 = sshll.u32 %s0, 4
      %s17 = int_to_ptr.hbm [resolvable:$true] %s16
      %s18 = sshll.u32 [#allocation2], 4
      %s19 = int_to_ptr.vmem [resolvable:$true] %s18
      %24 = dma.hbm_to_vmem [thread:$0]  %s17, 128, %s19, [#allocation3], 64, 64, 4
    $region5: #{tpu_custom_call.1} parent=1 // pred_fallthru
      _
    // Predicated region
    $region6: #{tpu_custom_call.1} parent=1 // pred_check
      _
    $region7: #{tpu_custom_call.1} parent=1 // pred_check_branch
      %26 = sbr.rel (0) target = $region9
    $region8: #{tpu_custom_call.1} parent=1 // pred_region
      _
    $region9: #{tpu_custom_call.1} parent=1 // pred_fallthru
      _
    // Predicated region
    $region10: #{tpu_custom_call.1} parent=1 // pred_check
      _
    $region11: #{tpu_custom_call.1} parent=1 // pred_check_branch
      %28 = sbr.rel (0) target = $region13
    $region12: #{tpu_custom_call.1} parent=1 // pred_region
      %30 = vsyncadd [#allocation5], 0
      %s31 = sshll.u32 %s2, 4
      %s32 = int_to_ptr.hbm [resolvable:$true] %s31
      %s33 = sshll.u32 [#allocation4], 4
      %s34 = int_to_ptr.vmem [resolvable:$true] %s33
      %39 = dma.hbm_to_vmem [thread:$0]  %s32, 2048, %s34, [#allocation5], 64, 64, 4
    $region13: #{tpu_custom_call.1} parent=1 // pred_fallthru
      _
    // Predicated region
    $region14: #{tpu_custom_call.1} parent=1 // pred_check
      _
    $region15: #{tpu_custom_call.1} parent=1 // pred_check_branch
      %41 = sbr.rel (0) target = $region17
    $region16: #{tpu_custom_call.1} parent=1 // pred_region
      _
    $region17: #{tpu_custom_call.1} parent=1 // pred_fallthru
      _
    // Predicated region
    $region18: #{tpu_custom_call.1} parent=1 // pred_check
      _
    $region19: #{tpu_custom_call.1} parent=1 // pred_check_branch
      %43 = sbr.rel (0) target = $region21
    $region20: #{tpu_custom_call.1} parent=1 // pred_region
      %45 = vsyncadd [#allocation5], 0
      %s47 = sshll.u32 %s4, 4
      %s48 = int_to_ptr.hbm [resolvable:$true] %s47
      %s49 = sshll.u32 [#allocation6], 4
      %s50 = int_to_ptr.vmem [resolvable:$true] %s49
      %52 = dma.hbm_to_vmem [thread:$0]  %s48, 64, %s50, [#allocation5]
    $region21: #{tpu_custom_call.1} parent=1 // pred_fallthru
      _
    // Predicated region
    $region22: #{tpu_custom_call.1} parent=1 // pred_check
      _
    $region23: #{tpu_custom_call.1} parent=1 // pred_check_branch
      %54 = sbr.rel (0) target = $region25
    $region24: #{tpu_custom_call.1} parent=1 // pred_region
      %56 = dma.done [#allocation3], 128
    $region25: #{tpu_custom_call.1} parent=1 // pred_fallthru
      _
    // Predicated region
    $region26: #{tpu_custom_call.1} parent=1 // pred_check
      _
    $region27: #{tpu_custom_call.1} parent=1 // pred_check_branch
      %58 = sbr.rel (0) target = $region29
    $region28: #{tpu_custom_call.1} parent=1 // pred_region
      %60 = dma.done [#allocation5], 2048
    $region29: #{tpu_custom_call.1} parent=1 // pred_fallthru
      _
    // Predicated region
    $region30: #{tpu_custom_call.1} parent=1 // pred_check
      _
    $region31: #{tpu_custom_call.1} parent=1 // pred_check_branch
      %62 = sbr.rel (0) target = $region33
    $region32: #{tpu_custom_call.1} parent=1 // pred_region
      %64 = dma.done [#allocation5], 64
    $region33: #{tpu_custom_call.1} parent=1 // pred_fallthru
      _
    %v65 = vld [vmem:[#allocation6] sm:$0x1]
    %v66 = vld [vmem:[#allocation6 + $0x1] sm:$0x1]
    %v67 = vld [vmem:[#allocation6 + $0x2] sm:$0x1]
    %v68 = vld [vmem:[#allocation6 + $0x3] sm:$0x1]
    %v69 = vld [vmem:[#allocation2] sm:$0xf]
    %v70 = vld [vmem:[#allocation2 + $0x4] sm:$0xf]
    %v71 = vld [vmem:[%s1] sm:$0xf]
    %v72 = vld [vmem:[%s1 + $0x4] sm:$0xf]
    %v73 = vld [vmem:[%s1 + $0x8] sm:$0xf]
    %v74 = vld [vmem:[%s1 + $0xc] sm:$0xf]
    %v75 = vld [vmem:[%s1 + $0x10] sm:$0xf]
    %v76 = vld [vmem:[%s1 + $0x14] sm:$0xf]
    %v77 = vld [vmem:[%s1 + $0x18] sm:$0xf]
    %v78 = vld [vmem:[%s1 + $0x1c] sm:$0xf]
    %v79 = vld [vmem:[%s1 + $0x20] sm:$0xf]
    %v80 = vld [vmem:[%s1 + $0x24] sm:$0xf]
    %v81 = vld [vmem:[%s1 + $0x28] sm:$0xf]
    %v82 = vld [vmem:[%s1 + $0x2c] sm:$0xf]
    %v83 = vld [vmem:[%s1 + $0x30] sm:$0xf]
    %v84 = vld [vmem:[%s1 + $0x34] sm:$0xf]
    %v85 = vld [vmem:[%s1 + $0x38] sm:$0xf]
    %v86 = vld [vmem:[%s1 + $0x3c] sm:$0xf]
    %v87 = vperm.slane %v65, 0
    %v90 = vunpack.c.l.b16 %v69
    %v91 = vunpack.c.l.b16 %v70
    %v92 = vpack.c.b16 %v91, %v90
    %v110 = vunpack.c.l.b16 %v71
    %v111 = vunpack.c.l.b16 %v72
    %v112 = vunpack.c.l.b16 %v73
    %v113 = vunpack.c.l.b16 %v74
    %v114 = vunpack.c.l.b16 %v75
    %v115 = vunpack.c.l.b16 %v76
    %v116 = vunpack.c.l.b16 %v77
    %v117 = vunpack.c.l.b16 %v78
    %v118 = vunpack.c.l.b16 %v79
    %v119 = vunpack.c.l.b16 %v80
    %v120 = vunpack.c.l.b16 %v81
    %v121 = vunpack.c.l.b16 %v82
    %v122 = vunpack.c.l.b16 %v83
    %v123 = vunpack.c.l.b16 %v84
    %v124 = vunpack.c.l.b16 %v85
    %v125 = vunpack.c.l.b16 %v86
    %v126 = vpack.c.b16 %v111, %v110
    %v127 = vpack.c.b16 %v113, %v112
    %v128 = vpack.c.b16 %v115, %v114
    %v129 = vpack.c.b16 %v117, %v116
    %v130 = vpack.c.b16 %v119, %v118
    %v131 = vpack.c.b16 %v121, %v120
    %v132 = vpack.c.b16 %v123, %v122
    %v133 = vpack.c.b16 %v125, %v124
    %142 = vmatpush.bf16.msra.mxu0 %v133
    %143 = vmatpush.bf16.msra.mxu0 %v132
    %144 = vmatpush.bf16.msra.mxu0 %v131
    %145 = vmatpush.bf16.msra.mxu0 %v130
    %146 = vmatpush.bf16.msra.mxu0 %v129
    %147 = vmatpush.bf16.msra.mxu0 %v128
    %148 = vmatpush.bf16.msra.mxu0 %v127
    %149 = vmatpush.bf16.msra.mxu0 %v126
    %150 = vmatmul.bf16.gmra.mxu0 %v92
    %v151 = vpop.f32.mrf.mxu0
    %v152 = vadd.f32 %v87, %v151
    %v153 = vpop.f32.mrf.mxu0
    %v154 = vadd.f32 %v87, %v153
    %155 = vdwg.mxu0
    %v156 = vmax.f32 %v152, 0.0
    %v157 = vmax.f32 %v154, 0.0
    %v158 = vpack.c.bf16 %v157, %v156
    %v159 = vld [vmem:[#allocation4] sm:$0xf]
    %v160 = vld [vmem:[#allocation4 + $0x4] sm:$0xf]
    %v161 = vld [vmem:[#allocation4 + $0x8] sm:$0xf]
    %v162 = vld [vmem:[#allocation4 + $0xc] sm:$0xf]
    %v163 = vld [vmem:[#allocation4 + $0x10] sm:$0xf]
    %v164 = vld [vmem:[#allocation4 + $0x14] sm:$0xf]
    %v165 = vld [vmem:[#allocation4 + $0x18] sm:$0xf]
    %v166 = vld [vmem:[#allocation4 + $0x1c] sm:$0xf]
    %v167 = vld [vmem:[#allocation4 + $0x20] sm:$0xf]
    %v168 = vld [vmem:[#allocation4 + $0x24] sm:$0xf]
    %v169 = vld [vmem:[#allocation4 + $0x28] sm:$0xf]
    %v170 = vld [vmem:[#allocation4 + $0x2c] sm:$0xf]
    %v171 = vld [vmem:[#allocation4 + $0x30] sm:$0xf]
    %v172 = vld [vmem:[#allocation4 + $0x34] sm:$0xf]
    %v173 = vld [vmem:[#allocation4 + $0x38] sm:$0xf]
    %v174 = vld [vmem:[#allocation4 + $0x3c] sm:$0xf]
    %v175 = vperm.slane %v66, 0
    %v192 = vunpack.c.l.b16 %v159
    %v193 = vunpack.c.l.b16 %v160
    %v194 = vunpack.c.l.b16 %v161
    %v195 = vunpack.c.l.b16 %v162
    %v196 = vunpack.c.l.b16 %v163
    %v197 = vunpack.c.l.b16 %v164
    %v198 = vunpack.c.l.b16 %v165
    %v199 = vunpack.c.l.b16 %v166
    %v200 = vunpack.c.l.b16 %v167
    %v201 = vunpack.c.l.b16 %v168
    %v202 = vunpack.c.l.b16 %v169
    %v203 = vunpack.c.l.b16 %v170
    %v204 = vunpack.c.l.b16 %v171
    %v205 = vunpack.c.l.b16 %v172
    %v206 = vunpack.c.l.b16 %v173
    %v207 = vunpack.c.l.b16 %v174
    %v208 = vpack.c.b16 %v193, %v192
    %v209 = vpack.c.b16 %v195, %v194
    %v210 = vpack.c.b16 %v197, %v196
    %v211 = vpack.c.b16 %v199, %v198
    %v212 = vpack.c.b16 %v201, %v200
    %v213 = vpack.c.b16 %v203, %v202
    %v214 = vpack.c.b16 %v205, %v204
    %v215 = vpack.c.b16 %v207, %v206
    %224 = vmatpush.bf16.msra.mxu0 %v215
    %225 = vmatpush.bf16.msra.mxu0 %v214
    %226 = vmatpush.bf16.msra.mxu0 %v213
    %227 = vmatpush.bf16.msra.mxu0 %v212
    %228 = vmatpush.bf16.msra.mxu0 %v211
    %229 = vmatpush.bf16.msra.mxu0 %v210
    %230 = vmatpush.bf16.msra.mxu0 %v209
    %231 = vmatpush.bf16.msra.mxu0 %v208
    %232 = vmatmul.bf16.gmra.mxu0 %v158
    %v233 = vpop.f32.mrf.mxu0
    %v234 = vadd.f32 %v175, %v233
    %v235 = vpop.f32.mrf.mxu0
    %v236 = vadd.f32 %v175, %v235
    %237 = vdwg.mxu0
    %v238 = vmax.f32 %v234, 0.0
    %v239 = vmax.f32 %v236, 0.0
    %v240 = vpack.c.bf16 %v239, %v238
    %s241 = scalar_lea.vmem [#allocation4], 64
    %v242 = vld [vmem:[%s241] sm:$0xf]
    %v243 = vld [vmem:[%s241 + $0x4] sm:$0xf]
    %v244 = vld [vmem:[%s241 + $0x8] sm:$0xf]
    %v245 = vld [vmem:[%s241 + $0xc] sm:$0xf]
    %v246 = vld [vmem:[%s241 + $0x10] sm:$0xf]
    %v247 = vld [vmem:[%s241 + $0x14] sm:$0xf]
    %v248 = vld [vmem:[%s241 + $0x18] sm:$0xf]
    %v249 = vld [vmem:[%s241 + $0x1c] sm:$0xf]
    %v250 = vld [vmem:[%s241 + $0x20] sm:$0xf]
    %v251 = vld [vmem:[%s241 + $0x24] sm:$0xf]
    %v252 = vld [vmem:[%s241 + $0x28] sm:$0xf]
    %v253 = vld [vmem:[%s241 + $0x2c] sm:$0xf]
    %v254 = vld [vmem:[%s241 + $0x30] sm:$0xf]
    %v255 = vld [vmem:[%s241 + $0x34] sm:$0xf]
    %v256 = vld [vmem:[%s241 + $0x38] sm:$0xf]
    %v257 = vld [vmem:[%s241 + $0x3c] sm:$0xf]
    %v258 = vperm.slane %v67, 0
    %v275 = vunpack.c.l.b16 %v242
    %v276 = vunpack.c.l.b16 %v243
    %v277 = vunpack.c.l.b16 %v244
    %v278 = vunpack.c.l.b16 %v245
    %v279 = vunpack.c.l.b16 %v246
    %v280 = vunpack.c.l.b16 %v247
    %v281 = vunpack.c.l.b16 %v248
    %v282 = vunpack.c.l.b16 %v249
    %v283 = vunpack.c.l.b16 %v250
    %v284 = vunpack.c.l.b16 %v251
    %v285 = vunpack.c.l.b16 %v252
    %v286 = vunpack.c.l.b16 %v253
    %v287 = vunpack.c.l.b16 %v254
    %v288 = vunpack.c.l.b16 %v255
    %v289 = vunpack.c.l.b16 %v256
    %v290 = vunpack.c.l.b16 %v257
    %v291 = vpack.c.b16 %v276, %v275
    %v292 = vpack.c.b16 %v278, %v277
    %v293 = vpack.c.b16 %v280, %v279
    %v294 = vpack.c.b16 %v282, %v281
    %v295 = vpack.c.b16 %v284, %v283
    %v296 = vpack.c.b16 %v286, %v285
    %v297 = vpack.c.b16 %v288, %v287
    %v298 = vpack.c.b16 %v290, %v289
    %307 = vmatpush.bf16.msra.mxu0 %v298
    %308 = vmatpush.bf16.msra.mxu0 %v297
    %309 = vmatpush.bf16.msra.mxu0 %v296
    %310 = vmatpush.bf16.msra.mxu0 %v295
    %311 = vmatpush.bf16.msra.mxu0 %v294
    %312 = vmatpush.bf16.msra.mxu0 %v293
    %313 = vmatpush.bf16.msra.mxu0 %v292
    %314 = vmatpush.bf16.msra.mxu0 %v291
    %315 = vmatmul.bf16.gmra.mxu0 %v240
    %v316 = vpop.f32.mrf.mxu0
    %v317 = vadd.f32 %v258, %v316
    %v318 = vpop.f32.mrf.mxu0
    %v319 = vadd.f32 %v258, %v318
    %320 = vdwg.mxu0
    %v321 = vmax.f32 %v317, 0.0
    %v322 = vmax.f32 %v319, 0.0
    %v323 = vpack.c.bf16 %v322, %v321
    %v324 = vld [vmem:[%s3] sm:$0xf]
    %v325 = vld [vmem:[%s3 + $0x4] sm:$0xf]
    %v326 = vld [vmem:[%s3 + $0x8] sm:$0xf]
    %v327 = vld [vmem:[%s3 + $0xc] sm:$0xf]
    %v328 = vld [vmem:[%s3 + $0x10] sm:$0xf]
    %v329 = vld [vmem:[%s3 + $0x14] sm:$0xf]
    %v330 = vld [vmem:[%s3 + $0x18] sm:$0xf]
    %v331 = vld [vmem:[%s3 + $0x1c] sm:$0xf]
    %v332 = vld [vmem:[%s3 + $0x20] sm:$0xf]
    %v333 = vld [vmem:[%s3 + $0x24] sm:$0xf]
    %v334 = vld [vmem:[%s3 + $0x28] sm:$0xf]
    %v335 = vld [vmem:[%s3 + $0x2c] sm:$0xf]
    %v336 = vld [vmem:[%s3 + $0x30] sm:$0xf]
    %v337 = vld [vmem:[%s3 + $0x34] sm:$0xf]
    %v338 = vld [vmem:[%s3 + $0x38] sm:$0xf]
    %v339 = vld [vmem:[%s3 + $0x3c] sm:$0xf]
    %v340 = vperm.slane %v68, 0
    %v357 = vunpack.c.l.b16 %v324
    %v358 = vunpack.c.l.b16 %v325
    %v359 = vunpack.c.l.b16 %v326
    %v360 = vunpack.c.l.b16 %v327
    %v361 = vunpack.c.l.b16 %v328
    %v362 = vunpack.c.l.b16 %v329
    %v363 = vunpack.c.l.b16 %v330
    %v364 = vunpack.c.l.b16 %v331
    %v365 = vunpack.c.l.b16 %v332
    %v366 = vunpack.c.l.b16 %v333
    %v367 = vunpack.c.l.b16 %v334
    %v368 = vunpack.c.l.b16 %v335
    %v369 = vunpack.c.l.b16 %v336
    %v370 = vunpack.c.l.b16 %v337
    %v371 = vunpack.c.l.b16 %v338
    %v372 = vunpack.c.l.b16 %v339
    %v373 = vpack.c.b16 %v358, %v357
    %v374 = vpack.c.b16 %v360, %v359
    %v375 = vpack.c.b16 %v362, %v361
    %v376 = vpack.c.b16 %v364, %v363
    %v377 = vpack.c.b16 %v366, %v365
    %v378 = vpack.c.b16 %v368, %v367
    %v379 = vpack.c.b16 %v370, %v369
    %v380 = vpack.c.b16 %v372, %v371
    %389 = vmatpush.bf16.msra.mxu0 %v380
    %390 = vmatpush.bf16.msra.mxu0 %v379
    %391 = vmatpush.bf16.msra.mxu0 %v378
    %392 = vmatpush.bf16.msra.mxu0 %v377
    %393 = vmatpush.bf16.msra.mxu0 %v376
    %394 = vmatpush.bf16.msra.mxu0 %v375
    %395 = vmatpush.bf16.msra.mxu0 %v374
    %396 = vmatpush.bf16.msra.mxu0 %v373
    %397 = vmatmul.bf16.gmra.mxu0 %v323
    %v398 = vpop.f32.mrf.mxu0
    %v399 = vadd.f32 %v340, %v398
    %v400 = vpop.f32.mrf.mxu0
    %v401 = vadd.f32 %v340, %v400
    %402 = vdwg.mxu0
    %v403 = vmax.f32 %v399, 0.0
    %v404 = vmax.f32 %v401, 0.0
    %v405 = vand.u32 2147483647, %v399
    %v406 = vand.u32 2147483647, %v401
    %v407 = vsub.f32 0.0, %v405
    %v408 = vsub.f32 0.0, %v406
    %v409 = vmul.f32 %v407, 1.442695
    %v410 = vpow.pop %v409
    %v411 = vmul.f32 %v408, 1.442695
    %v412 = vpow.pop %v411
    %v413 = vadd.f32 %v410, 1.0
    %v414 = vlog2.pop %v413
    %v415 = vmul.f32 %v414, 0.6931472
    %v416 = vmul.f32 -0.5, %v410
    %v417 = vadd.f32 %v416, 1.0
    %v418 = vmul.f32 %v417, %v410
    %v419 = vand.u32 2147483647, %v410
    %vm420 = vcmp.lt.f32.partialorder %v419, 0.0004427343
    %v421 = vsel %vm420, %v418, %v415
    %v422 = vadd.f32 %v412, 1.0
    %v423 = vlog2.pop %v422
    %v424 = vmul.f32 %v423, 0.6931472
    %v425 = vmul.f32 -0.5, %v412
    %v426 = vadd.f32 %v425, 1.0
    %v427 = vmul.f32 %v426, %v412
    %v428 = vand.u32 2147483647, %v412
    %vm429 = vcmp.lt.f32.partialorder %v428, 0.0004427343
    %v430 = vsel %vm429, %v427, %v424
    %v431 = vadd.f32 %v403, %v421
    %v432 = vadd.f32 %v404, %v430
    %v433 = vlaneseq
    %v434 = vand.u32 %v433, 127
    %vm435 = vcmp.ge.s32.totalorder %v434, 2
    %v436 = vmul.f32 %v431, 0.9
    %v437 = vmul.f32 %v432, 0.9
    %v438 = vadd.f32 %v436, 0.1
    %v439 = vadd.f32 %v437, 0.1
    %v440 = vsel %vm435, %v438, %v399
    %v441 = vsel %vm435, %v439, %v401
    %vm442 = vcmask 31744
    %443 = vst.msk [vmem:[%s5] sm:$0xff] %vm442, %v440
    %444 = vst.msk [vmem:[%s5 + $0x8] sm:$0xff] %vm442, %v441
    // Predicated region
    $region34: #{tpu_custom_call.1} parent=1 // pred_check
      _
    $region35: #{tpu_custom_call.1} parent=1 // pred_check_branch
      %446 = sbr.rel (0) target = $region37
    $region36: #{tpu_custom_call.1} parent=1 // pred_region
      _
    $region37: #{tpu_custom_call.1} parent=1 // pred_fallthru
      _
    // Predicated region
    $region38: #{tpu_custom_call.1} parent=1 // pred_check
      _
    $region39: #{tpu_custom_call.1} parent=1 // pred_check_branch
      %448 = sbr.rel (0) target = $region41
    $region40: #{tpu_custom_call.1} parent=1 // pred_region
      _
    $region41: #{tpu_custom_call.1} parent=1 // pred_fallthru
      _
    %449 = vsyncpa [#allocation3], 1
    %450 = vsyncpa [#allocation5], 1

</llo_original>
